<compile_context>
chip_gen: v7x
topology: tpu7x:2x2x1
jax: 0.10.0
libtpu: 0.0.40
codegen_flags: <defaults>
</compile_context>

<pallas_src>
import jax
import jax.numpy as jnp
from jax import lax
from jax.experimental import pallas as pl
from jax.experimental.pallas import tpu as pltpu


def _round_up(x, m):
    return ((x + m - 1) // m) * m


def _mlp_tail(emb_h, cfeat, wg_ref, bg_ref, w1g_ref, b1_ref,
              w2_ref, b2_ref, w3_ref, b3_ref, out_ref):
    """Shared gated-MLP tail. All matmuls bf16 x bf16, f32 accumulation, f32 biases."""
    f32, bf16 = jnp.float32, jnp.bfloat16
    # gate branch: sigmoid(blockdiag(Wuc, Wic)^T @ [uc; ic] + [buc; bic]^T) -> (dce, TB)
    gate = jax.nn.sigmoid(
        jnp.dot(wg_ref[...], cfeat, preferred_element_type=f32) + bg_ref[...])
    # net layer 1 (embedding contribution arrives already projected through W1)
    h1 = jax.nn.sigmoid(
        emb_h
        + jnp.dot(w1g_ref[...], gate.astype(bf16), preferred_element_type=f32)
        + b1_ref[...])
    # net layer 2
    h2 = jax.nn.sigmoid(
        jnp.dot(w2_ref[...], h1.astype(bf16), preferred_element_type=f32) + b2_ref[...])
    # net layer 3: (1, dh) @ (dh, TB) -> (1, TB): lane-dense, no transpose anywhere.
    out = jax.nn.sigmoid(
        jnp.dot(w3_ref[...], h2.astype(bf16), preferred_element_type=f32) + b3_ref[...])
    out_ref[...] = out.astype(out_ref.dtype)


def _make_kernel(fuse_gather):
    def kernel(*refs):
        if fuse_gather:
            (ids_ref, cfeat_ref, utw_ref, itw_ref,
             wg_ref, bg_ref, w1g_ref, b1_ref,
             w2_ref, b2_ref, w3_ref, b3_ref, out_ref) = refs
            duser = utw_ref.shape[1]
            ditem = itw_ref.shape[1]
            tb = ids_ref.shape[1]
            uid = ids_ref[0:1, :]                      # (1, TB) int32
            iid = ids_ref[1:2, :]
            # Embedding gather fused as one-hot matmuls on the MXU against the
            # pre-folded (table @ W1_rowblock)^T projections held in VMEM.
            onehot_u = (lax.broadcasted_iota(jnp.int32, (duser, tb), 0)
                        == uid).astype(jnp.bfloat16)
            onehot_i = (lax.broadcasted_iota(jnp.int32, (ditem, tb), 0)
                        == iid).astype(jnp.bfloat16)
            emb_h = (jnp.dot(utw_ref[...], onehot_u, preferred_element_type=jnp.float32)
                     + jnp.dot(itw_ref[...], onehot_i, preferred_element_type=jnp.float32))
            cfeat = cfeat_ref[...]
        else:
            (slab_ref, wg_ref, bg_ref, w1g_ref, b1_ref,
             w2_ref, b2_ref, w3_ref, b3_ref, out_ref) = refs
            dh = w2_ref.shape[0]
            emb_h = slab_ref[:dh, :].astype(jnp.float32)   # pre-gathered projection rows
            cfeat = slab_ref[dh:, :]
        _mlp_tail(emb_h, cfeat, wg_ref, bg_ref, w1g_ref, b1_ref,
                  w2_ref, b2_ref, w3_ref, b3_ref, out_ref)
    return kernel


def mymodel_forward(packed, user_id, user_c, item_id, item_c, fuse_gather=None):
    B = user_id.shape[0]
    bf16 = jnp.bfloat16
    dh = packed["w2_t"].shape[0]
    d_c = packed["wg_t"].shape[1]

    # Batch tile: multiple of 128 (lane-dense unmasked stores, aligned DMAs), as
    # large as possible to amortize the ~0.35us/grid-step overhead, but kept small
    # enough that num_tiles >= 2 when B allows, so v7x megacore can split the grid.
    TB = min(1024, _round_up(B, 128))
    if _round_up(B, TB) // TB < 2 and TB > 128:
        TB = max(128, _round_up(TB // 2, 128))
    B_pad = _round_up(B, TB)
    num_tiles = B_pad // TB

    def pad_cols(x):
        return jnp.pad(x, ((0, 0), (0, B_pad - B))) if B_pad != B else x

    # Feature-major (transposed) activations: batch on the lane axis.
    cfeat_t = jnp.concatenate([user_c, item_c], axis=1).T.astype(bf16)        # (d_c, B)

    weights = (packed["wg_t"], packed["bg_t"], packed["w1g_t"], packed["b1_t"],
               packed["w2_t"], packed["b2_t"], packed["w3_t"], packed["b3"])

    def const_spec(x):
        nd = x.ndim
        # Block index never changes -> Pallas DMAs these weights once.
        # TODO(synk): pipeline_mode=pl.Buffered(1) would halve constant-weight VMEM
        # at large dhidden on v7x; left at default buffering here (negligible at dh=32).
        return pl.BlockSpec(x.shape, lambda i, _nd=nd: (0,) * _nd)

    if fuse_gather is None:
        table_bytes = (packed["utw_t"].size + packed["itw_t"].size) * 2
        fuse_gather = table_bytes <= 4 * 1024 * 1024   # folded tables fit VMEM easily

    if fuse_gather:
        ids_t = jnp.stack([user_id, item_id], axis=0).astype(jnp.int32)       # (2, B)
        ins = (pad_cols(ids_t), pad_cols(cfeat_t),
               packed["utw_t"], packed["itw_t"]) + weights
        in_specs = [
            pl.BlockSpec((2, TB), lambda i: (0, i)),
            pl.BlockSpec((d_c, TB), lambda i: (0, i)),
            const_spec(packed["utw_t"]), const_spec(packed["itw_t"]),
        ] + [const_spec(w) for w in weights]
    else:
        # TODO(synk): for huge vocab tables the gather of the folded projections stays
        # in XLA; a fully in-kernel gather would need per-row DMA (memory_space=pl.ANY).
        embh_t = (jnp.take(packed["utw_t"], user_id, axis=1)
                  + jnp.take(packed["itw_t"], item_id, axis=1)).astype(bf16)  # (dh, B)
        slab = pad_cols(jnp.concatenate([embh_t, cfeat_t], axis=0))           # (dh+d_c, B_pad)
        ins = (slab,) + weights
        in_specs = [pl.BlockSpec((dh + d_c, TB), lambda i: (0, i))] \
            + [const_spec(w) for w in weights]

    out = pl.pallas_call(
        _make_kernel(fuse_gather),
        out_shape=jax.ShapeDtypeStruct((1, B_pad), jnp.float32),
        grid=(num_tiles,),
        in_specs=in_specs,
        out_specs=pl.BlockSpec((1, TB), lambda i: (0, i)),
        compiler_params=pltpu.CompilerParams(
            dimension_semantics=(pltpu.PARALLEL,)),   # megacore split on v7x
    )(*ins)
    return out[0, :B][:, None]


def init_params(key, duser, duser_c, ditem, ditem_c,
                duser_emb, duser_c_emb, ditem_emb, ditem_c_emb, dhidden):
    ks = jax.random.split(key, 12)
    s = 0.1
    d_cat = duser_emb + duser_c_emb + ditem_emb + ditem_c_emb
    return {
        "user_emb_table": s * jax.random.normal(ks[0], (duser, duser_emb), jnp.float32),
        "item_emb_table": s * jax.random.normal(ks[1], (ditem, ditem_emb), jnp.float32),
        "wuc": s * jax.random.normal(ks[2], (duser_c, duser_c_emb), jnp.float32),
        "buc": s * jax.random.normal(ks[3], (1, duser_c_emb), jnp.float32),
        "wic": s * jax.random.normal(ks[4], (ditem_c, ditem_c_emb), jnp.float32),
        "bic": s * jax.random.normal(ks[5], (1, ditem_c_emb), jnp.float32),
        "w1": s * jax.random.normal(ks[6], (d_cat, dhidden), jnp.float32),
        "b1": s * jax.random.normal(ks[7], (1, dhidden), jnp.float32),
        "w2": s * jax.random.normal(ks[8], (dhidden, dhidden), jnp.float32),
        "b2": s * jax.random.normal(ks[9], (1, dhidden), jnp.float32),
        "w3": s * jax.random.normal(ks[10], (dhidden, 1), jnp.float32),
        "b3": s * jax.random.normal(ks[11], (1, 1), jnp.float32),
    }


def pack_params(params, dtype=jnp.bfloat16):
    duser_emb = params["user_emb_table"].shape[1]
    duser_c, duser_c_emb = params["wuc"].shape
    ditem_emb = params["item_emb_table"].shape[1]
    ditem_c, ditem_c_emb = params["wic"].shape
    w1 = params["w1"]
    o0 = duser_emb
    o1 = o0 + duser_c_emb
    o2 = o1 + ditem_emb
    w1_ue, w1_uce, w1_ie, w1_ice = w1[:o0], w1[o0:o1], w1[o1:o2], w1[o2:]

    # Fold Embedding->Linear: (table @ W1_rowblock)^T, shape (dh, vocab).
    utw_t = (params["user_emb_table"] @ w1_ue).T
    itw_t = (params["item_emb_table"] @ w1_ie).T

    # Transposed block-diagonal gate weight: rows = [uce | ice] outputs, cols = [uc | ic].
    wg_t = jnp.zeros((duser_c_emb + ditem_c_emb, duser_c + ditem_c), jnp.float32)
    wg_t = wg_t.at[:duser_c_emb, :duser_c].set(params["wuc"].T)
    wg_t = wg_t.at[duser_c_emb:, duser_c:].set(params["wic"].T)

    return {
        "utw_t": utw_t.astype(dtype),                                   # (dh, duser)
        "itw_t": itw_t.astype(dtype),                                   # (dh, ditem)
        "wg_t": wg_t.astype(dtype),                                     # (dce, d_c)
        "bg_t": jnp.concatenate([params["buc"], params["bic"]], axis=1).T.astype(jnp.float32),
        "w1g_t": jnp.concatenate([w1_uce, w1_ice], axis=0).T.astype(dtype),  # (dh, dce)
        "b1_t": params["b1"].T.astype(jnp.float32),                     # (dh, 1)
        "w2_t": params["w2"].T.astype(dtype),                           # (dh, dh)
        "b2_t": params["b2"].T.astype(jnp.float32),                     # (dh, 1)
        "w3_t": params["w3"].T.astype(dtype),                           # (1, dh)
        "b3": params["b3"].astype(jnp.float32),                         # (1, 1)
    }


if __name__ == "__main__":
    # Small synthetic config (matches the PyTorch module's constructor).
    duser, ditem = 50, 60
    duser_c, ditem_c = 8, 6
    duser_emb, duser_c_emb = 16, 8
    ditem_emb, ditem_c_emb = 16, 8
    dhidden = 32
    B = 8

    key = jax.random.PRNGKey(0)
    kp, k1, k2, k3, k4 = jax.random.split(key, 5)
    params = init_params(kp, duser, duser_c, ditem, ditem_c,
                         duser_emb, duser_c_emb, ditem_emb, ditem_c_emb, dhidden)
    packed = pack_params(params)

    user_id = jax.random.randint(k1, (B,), 0, duser)
    item_id = jax.random.randint(k2, (B,), 0, ditem)
    user_c = jax.random.normal(k3, (B, duser_c), jnp.float32)
    item_c = jax.random.normal(k4, (B, ditem_c), jnp.float32)

    out_fused = jax.block_until_ready(
        mymodel_forward(packed, user_id, user_c, item_id, item_c))
    out_xla_gather = jax.block_until_ready(
        mymodel_forward(packed, user_id, user_c, item_id, item_c, fuse_gather=False))

    # Reference in plain JAX (same math, original untransposed f32 parameterization).
    ue = params["user_emb_table"][user_id]
    ie = params["item_emb_table"][item_id]
    uce = jax.nn.sigmoid(user_c @ params["wuc"] + params["buc"])
    ice = jax.nn.sigmoid(item_c @ params["wic"] + params["bic"])
    v = jnp.concatenate([ue, uce, ie, ice], axis=1)
    h1 = jax.nn.sigmoid(v @ params["w1"] + params["b1"])
    h2 = jax.nn.sigmoid(h1 @ params["w2"] + params["b2"])
    ref = jax.nn.sigmoid(h2 @ params["w3"] + params["b3"])

    assert out_fused.shape == (B, 1)
    # bf16 weights/activations (f32 accumulation) -> looser tolerance than pure f32.
    assert jnp.allclose(out_fused, ref, atol=2e-2), "fused-gather path mismatch"
    assert jnp.allclose(out_xla_gather, ref, atol=2e-2), "xla-gather path mismatch"

    print("KERNEL_OK")
</pallas_src>

<mosaic_0001>
module attributes {stable_mosaic.version = 11 : i64} {
  func.func @kernel(%arg0: i32, %arg1: memref<2x128xi32, #tpu.memory_space<vmem>>, %arg2: memref<14x128xbf16, #tpu.memory_space<vmem>>, %arg3: memref<32x50xbf16, #tpu.memory_space<vmem>>, %arg4: memref<32x60xbf16, #tpu.memory_space<vmem>>, %arg5: memref<16x14xbf16, #tpu.memory_space<vmem>>, %arg6: memref<16x1xf32, #tpu.memory_space<vmem>>, %arg7: memref<32x16xbf16, #tpu.memory_space<vmem>>, %arg8: memref<32x1xf32, #tpu.memory_space<vmem>>, %arg9: memref<32x32xbf16, #tpu.memory_space<vmem>>, %arg10: memref<32x1xf32, #tpu.memory_space<vmem>>, %arg11: memref<1x32xbf16, #tpu.memory_space<vmem>>, %arg12: memref<1x1xf32, #tpu.memory_space<vmem>>, %arg13: memref<1x128xf32, #tpu.memory_space<vmem>>) attributes {dimension_semantics = [#tpu.dimension_semantics<parallel>], iteration_bounds = array<i64: 1>, scalar_prefetch = 0 : i64, scratch_operands = 0 : i64, tpu.core_type = #tpu.core_type<tc>, window_params = [{transform_indices = @transform_0, window_bounds = array<i64: 2, 128>}, {transform_indices = @transform_1, window_bounds = array<i64: 14, 128>}, {pipeline_mode = #tpu.pipeline_mode<synchronous>, transform_indices = @transform_2, window_bounds = array<i64: 32, 50>}, {pipeline_mode = #tpu.pipeline_mode<synchronous>, transform_indices = @transform_3, window_bounds = array<i64: 32, 60>}, {pipeline_mode = #tpu.pipeline_mode<synchronous>, transform_indices = @transform_4, window_bounds = array<i64: 16, 14>}, {pipeline_mode = #tpu.pipeline_mode<synchronous>, transform_indices = @transform_5, window_bounds = array<i64: 16, 1>}, {pipeline_mode = #tpu.pipeline_mode<synchronous>, transform_indices = @transform_6, window_bounds = array<i64: 32, 16>}, {pipeline_mode = #tpu.pipeline_mode<synchronous>, transform_indices = @transform_7, window_bounds = array<i64: 32, 1>}, {pipeline_mode = #tpu.pipeline_mode<synchronous>, transform_indices = @transform_8, window_bounds = array<i64: 32, 32>}, {pipeline_mode = #tpu.pipeline_mode<synchronous>, transform_indices = @transform_9, window_bounds = array<i64: 32, 1>}, {pipeline_mode = #tpu.pipeline_mode<synchronous>, transform_indices = @transform_10, window_bounds = array<i64: 1, 32>}, {pipeline_mode = #tpu.pipeline_mode<synchronous>, transform_indices = @transform_11, window_bounds = array<i64: 1, 1>}, {transform_indices = @transform_12, window_bounds = array<i64: 1, 128>}]} {
    %c0 = arith.constant 0 : index
    %c0_0 = arith.constant 0 : index
    %0 = vector.load %arg1[%c0, %c0_0] : memref<2x128xi32, #tpu.memory_space<vmem>>, vector<1x128xi32>
    %c1 = arith.constant 1 : index
    %c0_1 = arith.constant 0 : index
    %1 = vector.load %arg1[%c1, %c0_1] : memref<2x128xi32, #tpu.memory_space<vmem>>, vector<1x128xi32>
    %2 = tpu.iota {dimensions = array<i32: 0>} : vector<50x128xi32>
    %3 = vector.broadcast %0 : vector<1x128xi32> to vector<50x128xi32>
    %4 = arith.cmpi eq, %2, %3 : vector<50x128xi32>
    %5 = arith.extui %4 : vector<50x128xi1> to vector<50x128xi32>
    %6 = arith.sitofp %5 : vector<50x128xi32> to vector<50x128xf32>
    %7 = arith.truncf %6 : vector<50x128xf32> to vector<50x128xbf16>
    %8 = tpu.iota {dimensions = array<i32: 0>} : vector<60x128xi32>
    %9 = vector.broadcast %1 : vector<1x128xi32> to vector<60x128xi32>
    %10 = arith.cmpi eq, %8, %9 : vector<60x128xi32>
    %11 = arith.extui %10 : vector<60x128xi1> to vector<60x128xi32>
    %12 = arith.sitofp %11 : vector<60x128xi32> to vector<60x128xf32>
    %13 = arith.truncf %12 : vector<60x128xf32> to vector<60x128xbf16>
    %c0_2 = arith.constant 0 : index
    %c0_3 = arith.constant 0 : index
    %14 = vector.load %arg3[%c0_2, %c0_3] : memref<32x50xbf16, #tpu.memory_space<vmem>>, vector<32x50xbf16>
    %cst = arith.constant dense<0.000000e+00> : vector<32x128xf32>
    %15 = tpu.matmul %14, %7, %cst {dimension_numbers = #tpu.dot_dimension_numbers<[1], [0], [0], [1], [0, 0, 1, 1], [], []>} : vector<32x50xbf16>, vector<50x128xbf16>, vector<32x128xf32> -> vector<32x128xf32>
    %c0_4 = arith.constant 0 : index
    %c0_5 = arith.constant 0 : index
    %16 = vector.load %arg4[%c0_4, %c0_5] : memref<32x60xbf16, #tpu.memory_space<vmem>>, vector<32x60xbf16>
    %cst_6 = arith.constant dense<0.000000e+00> : vector<32x128xf32>
    %17 = tpu.matmul %16, %13, %cst_6 {dimension_numbers = #tpu.dot_dimension_numbers<[1], [0], [0], [1], [0, 0, 1, 1], [], []>} : vector<32x60xbf16>, vector<60x128xbf16>, vector<32x128xf32> -> vector<32x128xf32>
    %18 = arith.addf %15, %17 : vector<32x128xf32>
    %c0_7 = arith.constant 0 : index
    %c0_8 = arith.constant 0 : index
    %19 = vector.load %arg2[%c0_7, %c0_8] : memref<14x128xbf16, #tpu.memory_space<vmem>>, vector<14x128xbf16>
    %c0_9 = arith.constant 0 : index
    %c0_10 = arith.constant 0 : index
    %20 = vector.load %arg5[%c0_9, %c0_10] : memref<16x14xbf16, #tpu.memory_space<vmem>>, vector<16x14xbf16>
    %cst_11 = arith.constant dense<0.000000e+00> : vector<16x128xf32>
    %21 = tpu.matmul %20, %19, %cst_11 {dimension_numbers = #tpu.dot_dimension_numbers<[1], [0], [0], [1], [0, 0, 1, 1], [], []>} : vector<16x14xbf16>, vector<14x128xbf16>, vector<16x128xf32> -> vector<16x128xf32>
    %c0_12 = arith.constant 0 : index
    %c0_13 = arith.constant 0 : index
    %22 = vector.load %arg6[%c0_12, %c0_13] : memref<16x1xf32, #tpu.memory_space<vmem>>, vector<16x1xf32>
    %23 = vector.broadcast %22 : vector<16x1xf32> to vector<16x128xf32>
    %24 = arith.addf %21, %23 : vector<16x128xf32>
    %25 = arith.negf %24 : vector<16x128xf32>
    %26 = math.exp %25 : vector<16x128xf32>
    %cst_14 = arith.constant 1.000000e+00 : f32
    %27 = vector.broadcast %cst_14 : f32 to vector<16x128xf32>
    %28 = arith.addf %27, %26 : vector<16x128xf32>
    %29 = arith.divf %27, %28 : vector<16x128xf32>
    %c0_15 = arith.constant 0 : index
    %c0_16 = arith.constant 0 : index
    %30 = vector.load %arg7[%c0_15, %c0_16] : memref<32x16xbf16, #tpu.memory_space<vmem>>, vector<32x16xbf16>
    %31 = arith.truncf %29 : vector<16x128xf32> to vector<16x128xbf16>
    %cst_17 = arith.constant dense<0.000000e+00> : vector<32x128xf32>
    %32 = tpu.matmul %30, %31, %cst_17 {dimension_numbers = #tpu.dot_dimension_numbers<[1], [0], [0], [1], [0, 0, 1, 1], [], []>} : vector<32x16xbf16>, vector<16x128xbf16>, vector<32x128xf32> -> vector<32x128xf32>
    %33 = arith.addf %18, %32 : vector<32x128xf32>
    %c0_18 = arith.constant 0 : index
    %c0_19 = arith.constant 0 : index
    %34 = vector.load %arg8[%c0_18, %c0_19] : memref<32x1xf32, #tpu.memory_space<vmem>>, vector<32x1xf32>
    %35 = vector.broadcast %34 : vector<32x1xf32> to vector<32x128xf32>
    %36 = arith.addf %33, %35 : vector<32x128xf32>
    %37 = arith.negf %36 : vector<32x128xf32>
    %38 = math.exp %37 : vector<32x128xf32>
    %cst_20 = arith.constant 1.000000e+00 : f32
    %39 = vector.broadcast %cst_20 : f32 to vector<32x128xf32>
    %40 = arith.addf %39, %38 : vector<32x128xf32>
    %41 = arith.divf %39, %40 : vector<32x128xf32>
    %c0_21 = arith.constant 0 : index
    %c0_22 = arith.constant 0 : index
    %42 = vector.load %arg9[%c0_21, %c0_22] : memref<32x32xbf16, #tpu.memory_space<vmem>>, vector<32x32xbf16>
    %43 = arith.truncf %41 : vector<32x128xf32> to vector<32x128xbf16>
    %cst_23 = arith.constant dense<0.000000e+00> : vector<32x128xf32>
    %44 = tpu.matmul %42, %43, %cst_23 {dimension_numbers = #tpu.dot_dimension_numbers<[1], [0], [0], [1], [0, 0, 1, 1], [], []>} : vector<32x32xbf16>, vector<32x128xbf16>, vector<32x128xf32> -> vector<32x128xf32>
    %c0_24 = arith.constant 0 : index
    %c0_25 = arith.constant 0 : index
    %45 = vector.load %arg10[%c0_24, %c0_25] : memref<32x1xf32, #tpu.memory_space<vmem>>, vector<32x1xf32>
    %46 = vector.broadcast %45 : vector<32x1xf32> to vector<32x128xf32>
    %47 = arith.addf %44, %46 : vector<32x128xf32>
    %48 = arith.negf %47 : vector<32x128xf32>
    %49 = math.exp %48 : vector<32x128xf32>
    %cst_26 = arith.constant 1.000000e+00 : f32
    %50 = vector.broadcast %cst_26 : f32 to vector<32x128xf32>
    %51 = arith.addf %50, %49 : vector<32x128xf32>
    %52 = arith.divf %50, %51 : vector<32x128xf32>
    %c0_27 = arith.constant 0 : index
    %c0_28 = arith.constant 0 : index
    %53 = vector.load %arg11[%c0_27, %c0_28] : memref<1x32xbf16, #tpu.memory_space<vmem>>, vector<1x32xbf16>
    %54 = arith.truncf %52 : vector<32x128xf32> to vector<32x128xbf16>
    %cst_29 = arith.constant dense<0.000000e+00> : vector<1x128xf32>
    %55 = tpu.matmul %53, %54, %cst_29 {dimension_numbers = #tpu.dot_dimension_numbers<[1], [0], [0], [1], [0, 0, 1, 1], [], []>} : vector<1x32xbf16>, vector<32x128xbf16>, vector<1x128xf32> -> vector<1x128xf32>
    %c0_30 = arith.constant 0 : index
    %c0_31 = arith.constant 0 : index
    %56 = vector.load %arg12[%c0_30, %c0_31] : memref<1x1xf32, #tpu.memory_space<vmem>>, vector<1x1xf32>
    %57 = vector.broadcast %56 : vector<1x1xf32> to vector<1x128xf32>
    %58 = arith.addf %55, %57 : vector<1x128xf32>
    %59 = arith.negf %58 : vector<1x128xf32>
    %60 = math.exp %59 : vector<1x128xf32>
    %cst_32 = arith.constant 1.000000e+00 : f32
    %61 = vector.broadcast %cst_32 : f32 to vector<1x128xf32>
    %62 = arith.addf %61, %60 : vector<1x128xf32>
    %63 = arith.divf %61, %62 : vector<1x128xf32>
    %c0_33 = arith.constant 0 : index
    %c0_34 = arith.constant 0 : index
    %64 = vector.load %arg13[%c0_33, %c0_34] : memref<1x128xf32, #tpu.memory_space<vmem>>, vector<1x128xf32>
    tpu.vector_store %arg13[%c0_33, %c0_34], %63 {strides = array<i32>} : memref<1x128xf32, #tpu.memory_space<vmem>>, vector<1x128xf32>,
    return
  }
  func.func @transform_0(%arg0: i32) -> (i32, i32) {
    %c0_i32 = arith.constant 0 : i32
    %c0_i32_0 = arith.constant 0 : i32
    return %c0_i32, %arg0 : i32, i32
  }
  func.func @transform_1(%arg0: i32) -> (i32, i32) {
    %c0_i32 = arith.constant 0 : i32
    %c0_i32_0 = arith.constant 0 : i32
    return %c0_i32, %arg0 : i32, i32
  }
  func.func @transform_2(%arg0: i32) -> (i32, i32) {
    %c0_i32 = arith.constant 0 : i32
    %c0_i32_0 = arith.constant 0 : i32
    %c0_i32_1 = arith.constant 0 : i32
    return %c0_i32, %c0_i32_0 : i32, i32
  }
  func.func @transform_3(%arg0: i32) -> (i32, i32) {
    %c0_i32 = arith.constant 0 : i32
    %c0_i32_0 = arith.constant 0 : i32
    %c0_i32_1 = arith.constant 0 : i32
    return %c0_i32, %c0_i32_0 : i32, i32
  }
  func.func @transform_4(%arg0: i32) -> (i32, i32) {
    %c0_i32 = arith.constant 0 : i32
    %c0_i32_0 = arith.constant 0 : i32
    %c0_i32_1 = arith.constant 0 : i32
    return %c0_i32, %c0_i32_0 : i32, i32
  }
  func.func @transform_5(%arg0: i32) -> (i32, i32) {
    %c0_i32 = arith.constant 0 : i32
    %c0_i32_0 = arith.constant 0 : i32
    %c0_i32_1 = arith.constant 0 : i32
    return %c0_i32, %c0_i32_0 : i32, i32
  }
  func.func @transform_6(%arg0: i32) -> (i32, i32) {
    %c0_i32 = arith.constant 0 : i32
    %c0_i32_0 = arith.constant 0 : i32
    %c0_i32_1 = arith.constant 0 : i32
    return %c0_i32, %c0_i32_0 : i32, i32
  }
  func.func @transform_7(%arg0: i32) -> (i32, i32) {
    %c0_i32 = arith.constant 0 : i32
    %c0_i32_0 = arith.constant 0 : i32
    %c0_i32_1 = arith.constant 0 : i32
    return %c0_i32, %c0_i32_0 : i32, i32
  }
  func.func @transform_8(%arg0: i32) -> (i32, i32) {
    %c0_i32 = arith.constant 0 : i32
    %c0_i32_0 = arith.constant 0 : i32
    %c0_i32_1 = arith.constant 0 : i32
    return %c0_i32, %c0_i32_0 : i32, i32
  }
  func.func @transform_9(%arg0: i32) -> (i32, i32) {
    %c0_i32 = arith.constant 0 : i32
    %c0_i32_0 = arith.constant 0 : i32
    %c0_i32_1 = arith.constant 0 : i32
    return %c0_i32, %c0_i32_0 : i32, i32
  }
  func.func @transform_10(%arg0: i32) -> (i32, i32) {
    %c0_i32 = arith.constant 0 : i32
    %c0_i32_0 = arith.constant 0 : i32
    %c0_i32_1 = arith.constant 0 : i32
    return %c0_i32, %c0_i32_0 : i32, i32
  }
  func.func @transform_11(%arg0: i32) -> (i32, i32) {
    %c0_i32 = arith.constant 0 : i32
    %c0_i32_0 = arith.constant 0 : i32
    %c0_i32_1 = arith.constant 0 : i32
    return %c0_i32, %c0_i32_0 : i32, i32
  }
  func.func @transform_12(%arg0: i32) -> (i32, i32) {
    %c0_i32 = arith.constant 0 : i32
    %c0_i32_0 = arith.constant 0 : i32
    return %c0_i32, %arg0 : i32, i32
  }
}

</mosaic_0001>

<llo_original>
// kernel: tpu_custom_call.1
$region0: #{tpu_custom_call.1}
  #allocation0 [shape = 'u32[]', space=smem, size = 0x4, offset = 0x4, fixed_abs, tag = 'smem constant byte address 0x4 - core index']
  #allocation1 [shape = 'u32[144,128]{1,0:T(1,128)}', space=vmem, size = 0x12000, scoped, tag = 'internal scratch']
  #allocation2 [shape = 'f32[1,1]{1,0:T(1,128)S(1)}', space=vmem, size = 0x200, scoped, tag = 'scoped memory for tpu_custom_call.1']
  %s0 = inlined_call_operand.vmem [shape: s32[2,128], index: 0, kind: input, shape index: {}]
  %s1 = inlined_call_operand.vmem [shape: bf16[14,128], index: 1, kind: input, shape index: {}]
  %s2 = inlined_call_operand.vmem [shape: bf16[32,50], index: 2, kind: input, shape index: {}]
  %s3 = inlined_call_operand.vmem [shape: bf16[32,60], index: 3, kind: input, shape index: {}]
  %s4 = inlined_call_operand.vmem [shape: bf16[16,14], index: 4, kind: input, shape index: {}]
  %s5 = inlined_call_operand.vmem [shape: f32[16,1], index: 5, kind: input, shape index: {}]
  %s6 = inlined_call_operand.vmem [shape: bf16[32,16], index: 6, kind: input, shape index: {}]
  %s7 = inlined_call_operand.vmem [shape: f32[32,1], index: 7, kind: input, shape index: {}]
  %s8 = inlined_call_operand.vmem [shape: bf16[32,32], index: 8, kind: input, shape index: {}]
  %s9 = inlined_call_operand.vmem [shape: f32[32,1], index: 9, kind: input, shape index: {}]
  %s10 = inlined_call_operand.vmem [shape: bf16[1,32], index: 10, kind: input, shape index: {}]
  %s11 = inlined_call_operand.<no memory space> [shape: f32[1,1], index: 11, kind: input, shape index: {}]
  %s12 = inlined_call_operand.hbm [shape: f32[1,128], index: 12, kind: output, shape index: {}]
  %s13 = sld [smem:[#allocation0]]
  $region58: #{tpu_custom_call.1} parent=0
    _
  %s15 = ssub.s32 1, %s13
  %s16 = scalar_select 0, %s15, %s13
  %v17 = vstv %s11
  %18 = vst [vmem:[#allocation2] sm:$0x1] %v17
  $region1: #{tpu_custom_call.1} parent=0
    #allocation3 [shape = 'u8[512]{0}', space=vmem, size = 0x400, scoped, tag = 'output window, operand 0, single buffered']
    #allocation4 [shape = 's32[1]{0}', space=sflag, size = 0x4, scoped, tag = 'scoped memory for tpu_custom_call.1']
    %19 = vsyncpa [#allocation4], 0
    // Predicated region
    $region2: #{tpu_custom_call.1} parent=1 // pred_check
      _
    $region3: #{tpu_custom_call.1} parent=1 // pred_check_branch
      %21 = sbr.rel (0) target = $region5
    $region4: #{tpu_custom_call.1} parent=1 // pred_region
      _
    $region5: #{tpu_custom_call.1} parent=1 // pred_fallthru
      _
    // Predicated region
    $region6: #{tpu_custom_call.1} parent=1 // pred_check
      _
    $region7: #{tpu_custom_call.1} parent=1 // pred_check_branch
      %23 = sbr.rel (0) target = $region9
    $region8: #{tpu_custom_call.1} parent=1 // pred_region
      _
    $region9: #{tpu_custom_call.1} parent=1 // pred_fallthru
      _
    // Predicated region
    $region10: #{tpu_custom_call.1} parent=1 // pred_check
      _
    $region11: #{tpu_custom_call.1} parent=1 // pred_check_branch
      %25 = sbr.rel (0) target = $region13
    $region12: #{tpu_custom_call.1} parent=1 // pred_region
      _
    $region13: #{tpu_custom_call.1} parent=1 // pred_fallthru
      _
    // Predicated region
    $region14: #{tpu_custom_call.1} parent=1 // pred_check
      _
    $region15: #{tpu_custom_call.1} parent=1 // pred_check_branch
      %27 = sbr.rel (0) target = $region17
    $region16: #{tpu_custom_call.1} parent=1 // pred_region
      _
    $region17: #{tpu_custom_call.1} parent=1 // pred_fallthru
      _
    // Predicated region
    $region18: #{tpu_custom_call.1} parent=1 // pred_check
      _
    $region19: #{tpu_custom_call.1} parent=1 // pred_check_branch
      %29 = sbr.rel (0) target = $region21
    $region20: #{tpu_custom_call.1} parent=1 // pred_region
      _
    $region21: #{tpu_custom_call.1} parent=1 // pred_fallthru
      _
    // Predicated region
    $region22: #{tpu_custom_call.1} parent=1 // pred_check
      _
    $region23: #{tpu_custom_call.1} parent=1 // pred_check_branch
      %31 = sbr.rel (0) target = $region25
    $region24: #{tpu_custom_call.1} parent=1 // pred_region
      _
    $region25: #{tpu_custom_call.1} parent=1 // pred_fallthru
      _
    // Predicated region
    $region26: #{tpu_custom_call.1} parent=1 // pred_check
      _
    $region27: #{tpu_custom_call.1} parent=1 // pred_check_branch
      %33 = sbr.rel (0) target = $region29
    $region28: #{tpu_custom_call.1} parent=1 // pred_region
      _
    $region29: #{tpu_custom_call.1} parent=1 // pred_fallthru
      _
    // Predicated region
    $region30: #{tpu_custom_call.1} parent=1 // pred_check
      _
    $region31: #{tpu_custom_call.1} parent=1 // pred_check_branch
      %35 = sbr.rel (0) target = $region33
    $region32: #{tpu_custom_call.1} parent=1 // pred_region
      _
    $region33: #{tpu_custom_call.1} parent=1 // pred_fallthru
      _
    // Predicated region
    $region34: #{tpu_custom_call.1} parent=1 // pred_check
      _
    $region35: #{tpu_custom_call.1} parent=1 // pred_check_branch
      %37 = sbr.rel (0) target = $region37
    $region36: #{tpu_custom_call.1} parent=1 // pred_region
      _
    $region37: #{tpu_custom_call.1} parent=1 // pred_fallthru
      _
    // Predicated region
    $region38: #{tpu_custom_call.1} parent=1 // pred_check
      _
    $region39: #{tpu_custom_call.1} parent=1 // pred_check_branch
      %39 = sbr.rel (0) target = $region41
    $region40: #{tpu_custom_call.1} parent=1 // pred_region
      _
    $region41: #{tpu_custom_call.1} parent=1 // pred_fallthru
      _
    // Predicated region
    $region42: #{tpu_custom_call.1} parent=1 // pred_check
      _
    $region43: #{tpu_custom_call.1} parent=1 // pred_check_branch
      %41 = sbr.rel (0) target = $region45
    $region44: #{tpu_custom_call.1} parent=1 // pred_region
      _
    $region45: #{tpu_custom_call.1} parent=1 // pred_fallthru
      _
    // Predicated region
    $region46: #{tpu_custom_call.1} parent=1 // pred_check
      _
    $region47: #{tpu_custom_call.1} parent=1 // pred_check_branch
      %43 = sbr.rel (0) target = $region49
    $region48: #{tpu_custom_call.1} parent=1 // pred_region
      _
    $region49: #{tpu_custom_call.1} parent=1 // pred_fallthru
      _
    %v45 = vld [vmem:[%s0] sm:$0x1]
    %v46 = vld [vmem:[%s0 + $0x1] sm:$0x1]
    %v47 = vlaneseq
    %v48 = vshrl.u32 %v47, 7
    %v49 = vadd.s32 %v48, 8
    %v50 = vadd.s32 %v48, 16
    %v51 = vadd.s32 %v48, 24
    %v52 = vadd.s32 %v48, 32
    %v53 = vadd.s32 %v48, 40
    %v54 = vadd.s32 %v48, 48
    %v55 = vlaneseq
    %v56 = vshrl.u32 %v55, 7
    %v57 = vsub.s32 0, %v56
    %v58 = vrot.slane %v45, %v57
    %vm59 = vcmp.eq.s32.totalorder %v48, %v58
    %vm60 = vcmp.eq.s32.totalorder %v49, %v58
    %vm61 = vcmp.eq.s32.totalorder %v50, %v58
    %vm62 = vcmp.eq.s32.totalorder %v51, %v58
    %vm63 = vcmp.eq.s32.totalorder %v52, %v58
    %vm64 = vcmp.eq.s32.totalorder %v53, %v58
    %vm65 = vcmp.eq.s32.totalorder %v54, %v58
    %v66 = vsel %vm59, 1, 0
    %v67 = vsel %vm60, 1, 0
    %v68 = vsel %vm61, 1, 0
    %v69 = vsel %vm62, 1, 0
    %v70 = vsel %vm63, 1, 0
    %v71 = vsel %vm64, 1, 0
    %v72 = vsel %vm65, 1, 0
    %v73 = vcvt.s32.f32 %v66
    %v74 = vcvt.s32.f32 %v67
    %v75 = vcvt.s32.f32 %v68
    %v76 = vcvt.s32.f32 %v69
    %v77 = vcvt.s32.f32 %v70
    %v78 = vcvt.s32.f32 %v71
    %v79 = vcvt.s32.f32 %v72
    %v80 = vpack.c.bf16 %v74, %v73
    %v81 = vpack.c.bf16 %v76, %v75
    %v82 = vpack.c.bf16 %v78, %v77
    %v83 = vpack.c.bf16 %v79, %v79
    %v84 = vadd.s32 %v48, 56
    %v85 = vlaneseq
    %v86 = vshrl.u32 %v85, 7
    %v87 = vsub.s32 0, %v86
    %v88 = vrot.slane %v46, %v87
    %vm89 = vcmp.eq.s32.totalorder %v48, %v88
    %vm90 = vcmp.eq.s32.totalorder %v49, %v88
    %vm91 = vcmp.eq.s32.totalorder %v50, %v88
    %vm92 = vcmp.eq.s32.totalorder %v51, %v88
    %vm93 = vcmp.eq.s32.totalorder %v52, %v88
    %vm94 = vcmp.eq.s32.totalorder %v53, %v88
    %vm95 = vcmp.eq.s32.totalorder %v54, %v88
    %vm96 = vcmp.eq.s32.totalorder %v84, %v88
    %v97 = vsel %vm89, 1, 0
    %v98 = vsel %vm90, 1, 0
    %v99 = vsel %vm91, 1, 0
    %v100 = vsel %vm92, 1, 0
    %v101 = vsel %vm93, 1, 0
    %v102 = vsel %vm94, 1, 0
    %v103 = vsel %vm95, 1, 0
    %v104 = vsel %vm96, 1, 0
    %v105 = vcvt.s32.f32 %v97
    %v106 = vcvt.s32.f32 %v98
    %v107 = vcvt.s32.f32 %v99
    %v108 = vcvt.s32.f32 %v100
    %v109 = vcvt.s32.f32 %v101
    %v110 = vcvt.s32.f32 %v102
    %v111 = vcvt.s32.f32 %v103
    %v112 = vcvt.s32.f32 %v104
    %v113 = vpack.c.bf16 %v106, %v105
    %v114 = vpack.c.bf16 %v108, %v107
    %v115 = vpack.c.bf16 %v110, %v109
    %v116 = vpack.c.bf16 %v112, %v111
    %v117 = vld [vmem:[%s2] sm:$0xf]
    %v118 = vld [vmem:[%s2 + $0x4] sm:$0xf]
    %v119 = vld [vmem:[%s2 + $0x8] sm:$0xf]
    %v120 = vld [vmem:[%s2 + $0xc] sm:$0xf]
    %v121 = vld [vmem:[%s3] sm:$0xf]
    %v122 = vld [vmem:[%s3 + $0x4] sm:$0xf]
    %v123 = vld [vmem:[%s3 + $0x8] sm:$0xf]
    %v124 = vld [vmem:[%s3 + $0xc] sm:$0xf]
    %v129 = vunpack.c.l.b16 %v121
    %v130 = vunpack.c.l.b16 %v122
    %v131 = vunpack.c.l.b16 %v123
    %v132 = vunpack.c.l.b16 %v124
    %v133 = vpack.c.b16 %v130, %v129
    %v134 = vpack.c.b16 %v132, %v131
    %vm135 = vcmask 490496
    %v137 = vsel %vm135, %v133, 0
    %v140 = vsel %vm135, %v134, 0
    %vm142 = vcmask 1045504
    %v144 = vsel %vm142, %v116, 0
    %146 = vmatprep.subr.bf16.mxu0 0
    %147 = vmatpush1.bf16.msra.mxu0 %v113
    %148 = vmatprep.subr.bf16.mxu0 0
    %149 = vmatpush1.bf16.msra.mxu0 %v114
    %150 = vmatprep.subr.bf16.mxu0 0
    %151 = vmatpush1.bf16.msra.mxu0 %v115
    %152 = vmatprep.subr.bf16.mxu0 0
    %153 = vmatpush1.bf16.msra.mxu0 %v144
    %154 = vmatprep.subr.bf16.mxu0 0
    %155 = vmatpush1.bf16.msra.mxu0 0
    %156 = vmatprep.subr.bf16.mxu0 0
    %157 = vmatpush1.bf16.msra.mxu0 0
    %158 = vmatprep.subr.bf16.mxu0 0
    %159 = vmatpush1.bf16.msra.mxu0 0
    %160 = vmatprep.subr.bf16.mxu0 0
    %161 = vmatpush1.bf16.msra.mxu0 0
    %162 = vmatprep.subr.bf16.mxu0 0
    %163 = vmatpush1.bf16.msra.mxu0 0
    %164 = vmatprep.subr.bf16.mxu0 0
    %165 = vmatpush1.bf16.msra.mxu0 0
    %166 = vmatprep.subr.bf16.mxu0 0
    %167 = vmatpush1.bf16.msra.mxu0 0
    %168 = vmatprep.subr.bf16.mxu0 0
    %169 = vmatpush1.bf16.msra.mxu0 0
    %170 = vmatprep.subr.bf16.mxu0 0
    %171 = vmatpush1.bf16.msra.mxu0 0
    %172 = vmatprep.subr.bf16.mxu0 0
    %173 = vmatpush1.bf16.msra.mxu0 0
    %174 = vmatprep.subr.bf16.mxu0 0
    %175 = vmatpush1.bf16.msra.mxu0 0
    %176 = vmatprep.subr.bf16.mxu0 0
    %177 = vmatpush1.bf16.msra.mxu0 0
    %178 = vmatprep.mubr.bf16.mxu0 0
    %179 = vmatmul.mubr.bf16.gmra.mrb[0].mxu0 %v137
    %v180 = vpop.f32.mrb[0].mxu0
    %v181 = vadd.f32 0.0, %v180
    %v182 = vpop.f32.mrb[0].mxu0
    %v183 = vpop.f32.mrb[0].mxu0
    %v184 = vadd.f32 0.0, %v183
    %v185 = vpop.f32.mrb[0].mxu0
    %186 = vmatprep.mubr.bf16.mxu0 0
    %187 = vmatmul.mubr.bf16.gmra.mrb[0].mxu0 %v140
    %v188 = vpop.f32.mrb[0].mxu0
    %v189 = vadd.f32 0.0, %v188
    %v190 = vpop.f32.mrb[0].mxu0
    %v191 = vpop.f32.mrb[0].mxu0
    %v192 = vadd.f32 0.0, %v191
    %v193 = vpop.f32.mrb[0].mxu0
    %194 = vdwg.mxu0
    %v199 = vunpack.c.l.b16 %v117
    %v200 = vunpack.c.l.b16 %v118
    %v201 = vunpack.c.l.b16 %v119
    %v202 = vunpack.c.l.b16 %v120
    %v203 = vpack.c.b16 %v200, %v199
    %v204 = vpack.c.b16 %v202, %v201
    %vm205 = vcmask 408576
    %v207 = vsel %vm205, %v203, 0
    %v210 = vsel %vm205, %v204, 0
    %vm212 = vcmask 1040384
    %v214 = vsel %vm212, %v83, 0
    %216 = vmatprep.subr.bf16.mxu0 0
    %217 = vmatpush1.bf16.msra.mxu0 %v80
    %218 = vmatprep.subr.bf16.mxu0 0
    %219 = vmatpush1.bf16.msra.mxu0 %v81
    %220 = vmatprep.subr.bf16.mxu0 0
    %221 = vmatpush1.bf16.msra.mxu0 %v82
    %222 = vmatprep.subr.bf16.mxu0 0
    %223 = vmatpush1.bf16.msra.mxu0 %v214
    %224 = vmatprep.subr.bf16.mxu0 0
    %225 = vmatpush1.bf16.msra.mxu0 0
    %226 = vmatprep.subr.bf16.mxu0 0
    %227 = vmatpush1.bf16.msra.mxu0 0
    %228 = vmatprep.subr.bf16.mxu0 0
    %229 = vmatpush1.bf16.msra.mxu0 0
    %230 = vmatprep.subr.bf16.mxu0 0
    %231 = vmatpush1.bf16.msra.mxu0 0
    %232 = vmatprep.subr.bf16.mxu0 0
    %233 = vmatpush1.bf16.msra.mxu0 0
    %234 = vmatprep.subr.bf16.mxu0 0
    %235 = vmatpush1.bf16.msra.mxu0 0
    %236 = vmatprep.subr.bf16.mxu0 0
    %237 = vmatpush1.bf16.msra.mxu0 0
    %238 = vmatprep.subr.bf16.mxu0 0
    %239 = vmatpush1.bf16.msra.mxu0 0
    %240 = vmatprep.subr.bf16.mxu0 0
    %241 = vmatpush1.bf16.msra.mxu0 0
    %242 = vmatprep.subr.bf16.mxu0 0
    %243 = vmatpush1.bf16.msra.mxu0 0
    %244 = vmatprep.subr.bf16.mxu0 0
    %245 = vmatpush1.bf16.msra.mxu0 0
    %246 = vmatprep.subr.bf16.mxu0 0
    %247 = vmatpush1.bf16.msra.mxu0 0
    %248 = vmatprep.mubr.bf16.mxu0 0
    %249 = vmatmul.mubr.bf16.gmra.mrb[0].mxu0 %v207
    %v250 = vpop.f32.mrb[0].mxu0
    %v251 = vadd.f32 %v181, %v250
    %v252 = vpop.f32.mrb[0].mxu0
    %v253 = vpop.f32.mrb[0].mxu0
    %v254 = vadd.f32 %v184, %v253
    %v255 = vpop.f32.mrb[0].mxu0
    %256 = vmatprep.mubr.bf16.mxu0 0
    %257 = vmatmul.mubr.bf16.gmra.mrb[0].mxu0 %v210
    %v258 = vpop.f32.mrb[0].mxu0
    %v259 = vadd.f32 %v189, %v258
    %v260 = vpop.f32.mrb[0].mxu0
    %v261 = vpop.f32.mrb[0].mxu0
    %v262 = vadd.f32 %v192, %v261
    %v263 = vpop.f32.mrb[0].mxu0
    %264 = vdwg.mxu0
    %v265 = vld [vmem:[%s1] sm:$0xf]
    %v266 = vld [vmem:[%s1 + $0x4] sm:$0x7]
    %v267 = vld [vmem:[%s4] sm:$0xf]
    %v268 = vld [vmem:[%s4 + $0x4] sm:$0xf]
    %v269 = vld [vmem:[%s5] sm:$0xff]
    %v270 = vld [vmem:[%s5 + $0x8] sm:$0xff]
    %272 = vset.pattern.permute.xlu0 0
    %273 = vperm.xlu0 %272, %v269
    %v274 = vpop.permute.xlu0 %273
    %277 = vset.pattern.permute.xlu0 0
    %278 = vperm.xlu0 %277, %v270
    %v279 = vpop.permute.xlu0 %278
    %v283 = vunpack.c.l.b16 %v267
    %v284 = vunpack.c.l.b16 %v268
    %v285 = vpack.c.b16 %v284, %v283
    %v288 = vunpack.c.l.b16 %v265
    %v289 = vunpack.c.l.b16 %v266
    %v290 = vpack.c.b16 %v289, %v288
    %vm291 = vcmask 113664
    %v293 = vsel %vm291, %v285, 0
    %vm295 = vcmask 1046528
    %v297 = vsel %vm295, %v290, 0
    %299 = vmatprep.subr.bf16.mxu0 0
    %300 = vmatpush1.bf16.msra.mxu0 %v297
    %301 = vmatprep.subr.bf16.mxu0 0
    %302 = vmatpush1.bf16.msra.mxu0 0
    %303 = vmatprep.subr.bf16.mxu0 0
    %304 = vmatpush1.bf16.msra.mxu0 0
    %305 = vmatprep.subr.bf16.mxu0 0
    %306 = vmatpush1.bf16.msra.mxu0 0
    %307 = vmatprep.subr.bf16.mxu0 0
    %308 = vmatpush1.bf16.msra.mxu0 0
    %309 = vmatprep.subr.bf16.mxu0 0
    %310 = vmatpush1.bf16.msra.mxu0 0
    %311 = vmatprep.subr.bf16.mxu0 0
    %312 = vmatpush1.bf16.msra.mxu0 0
    %313 = vmatprep.subr.bf16.mxu0 0
    %314 = vmatpush1.bf16.msra.mxu0 0
    %315 = vmatprep.subr.bf16.mxu0 0
    %316 = vmatpush1.bf16.msra.mxu0 0
    %317 = vmatprep.subr.bf16.mxu0 0
    %318 = vmatpush1.bf16.msra.mxu0 0
    %319 = vmatprep.subr.bf16.mxu0 0
    %320 = vmatpush1.bf16.msra.mxu0 0
    %321 = vmatprep.subr.bf16.mxu0 0
    %322 = vmatpush1.bf16.msra.mxu0 0
    %323 = vmatprep.subr.bf16.mxu0 0
    %324 = vmatpush1.bf16.msra.mxu0 0
    %325 = vmatprep.subr.bf16.mxu0 0
    %326 = vmatpush1.bf16.msra.mxu0 0
    %327 = vmatprep.subr.bf16.mxu0 0
    %328 = vmatpush1.bf16.msra.mxu0 0
    %329 = vmatprep.subr.bf16.mxu0 0
    %330 = vmatpush1.bf16.msra.mxu0 0
    %331 = vmatprep.mubr.bf16.mxu0 0
    %332 = vmatmul.mubr.bf16.gmra.mrb[0].mxu0 %v293
    %v333 = vpop.f32.mrb[0].mxu0
    %v334 = vadd.f32 %v274, %v333
    %v335 = vpop.f32.mrb[0].mxu0
    %v336 = vpop.f32.mrb[0].mxu0
    %v337 = vadd.f32 %v279, %v336
    %v338 = vpop.f32.mrb[0].mxu0
    %339 = vdwg.mxu0
    %v340 = vxor.u32 %v334, 2147483648
    %v341 = vxor.u32 %v337, 2147483648
    %v342 = vmul.f32 %v340, 1.442695
    %v343 = vpow.pop %v342
    %v344 = vmul.f32 %v341, 1.442695
    %v345 = vpow.pop %v344
    %v346 = vadd.f32 %v343, 1.0
    %v347 = vadd.f32 %v345, 1.0
    %v348 = vrcp.pop %v346
    %v349 = vmul.f32 1.0, %v348
    %v350 = vrcp.pop %v347
    %v351 = vmul.f32 1.0, %v350
    %v352 = vld [vmem:[%s6] sm:$0xf]
    %v353 = vld [vmem:[%s6 + $0x4] sm:$0xf]
    %v354 = vld [vmem:[%s6 + $0x8] sm:$0xf]
    %v355 = vld [vmem:[%s6 + $0xc] sm:$0xf]
    %v356 = vpack.c.bf16 %v351, %v349
    %v361 = vunpack.c.l.b16 %v352
    %v362 = vunpack.c.l.b16 %v353
    %v363 = vunpack.c.l.b16 %v354
    %v364 = vunpack.c.l.b16 %v355
    %v365 = vpack.c.b16 %v362, %v361
    %v366 = vpack.c.b16 %v364, %v363
    %vm367 = vcmask 130048
    %v369 = vsel %vm367, %v365, 0
    %v372 = vsel %vm367, %v366, 0
    %374 = vmatprep.subr.bf16.mxu0 0
    %375 = vmatpush1.bf16.msra.mxu0 %v356
    %376 = vmatprep.subr.bf16.mxu0 0
    %377 = vmatpush1.bf16.msra.mxu0 0
    %378 = vmatprep.subr.bf16.mxu0 0
    %379 = vmatpush1.bf16.msra.mxu0 0
    %380 = vmatprep.subr.bf16.mxu0 0
    %381 = vmatpush1.bf16.msra.mxu0 0
    %382 = vmatprep.subr.bf16.mxu0 0
    %383 = vmatpush1.bf16.msra.mxu0 0
    %384 = vmatprep.subr.bf16.mxu0 0
    %385 = vmatpush1.bf16.msra.mxu0 0
    %386 = vmatprep.subr.bf16.mxu0 0
    %387 = vmatpush1.bf16.msra.mxu0 0
    %388 = vmatprep.subr.bf16.mxu0 0
    %389 = vmatpush1.bf16.msra.mxu0 0
    %390 = vmatprep.subr.bf16.mxu0 0
    %391 = vmatpush1.bf16.msra.mxu0 0
    %392 = vmatprep.subr.bf16.mxu0 0
    %393 = vmatpush1.bf16.msra.mxu0 0
    %394 = vmatprep.subr.bf16.mxu0 0
    %395 = vmatpush1.bf16.msra.mxu0 0
    %396 = vmatprep.subr.bf16.mxu0 0
    %397 = vmatpush1.bf16.msra.mxu0 0
    %398 = vmatprep.subr.bf16.mxu0 0
    %399 = vmatpush1.bf16.msra.mxu0 0
    %400 = vmatprep.subr.bf16.mxu0 0
    %401 = vmatpush1.bf16.msra.mxu0 0
    %402 = vmatprep.subr.bf16.mxu0 0
    %403 = vmatpush1.bf16.msra.mxu0 0
    %404 = vmatprep.subr.bf16.mxu0 0
    %405 = vmatpush1.bf16.msra.mxu0 0
    %406 = vmatprep.mubr.bf16.mxu0 0
    %407 = vmatmul.mubr.bf16.gmra.mrb[0].mxu0 %v369
    %v408 = vpop.f32.mrb[0].mxu0
    %v409 = vadd.f32 0.0, %v408
    %v410 = vpop.f32.mrb[0].mxu0
    %v411 = vpop.f32.mrb[0].mxu0
    %v412 = vadd.f32 0.0, %v411
    %v413 = vpop.f32.mrb[0].mxu0
    %414 = vmatprep.mubr.bf16.mxu0 0
    %415 = vmatmul.mubr.bf16.gmra.mrb[0].mxu0 %v372
    %v416 = vpop.f32.mrb[0].mxu0
    %v417 = vadd.f32 0.0, %v416
    %v418 = vpop.f32.mrb[0].mxu0
    %v419 = vpop.f32.mrb[0].mxu0
    %v420 = vadd.f32 0.0, %v419
    %v421 = vpop.f32.mrb[0].mxu0
    %422 = vdwg.mxu0
    %v423 = vadd.f32 %v251, %v409
    %v424 = vadd.f32 %v254, %v412
    %v425 = vadd.f32 %v259, %v417
    %v426 = vadd.f32 %v262, %v420
    %v427 = vld [vmem:[%s7] sm:$0xff]
    %v428 = vld [vmem:[%s7 + $0x8] sm:$0xff]
    %v429 = vld [vmem:[%s7 + $0x10] sm:$0xff]
    %v430 = vld [vmem:[%s7 + $0x18] sm:$0xff]
    %432 = vset.pattern.permute.xlu0 0
    %433 = vperm.xlu0 %432, %v427
    %v434 = vpop.permute.xlu0 %433
    %437 = vset.pattern.permute.xlu0 0
    %438 = vperm.xlu0 %437, %v428
    %v439 = vpop.permute.xlu0 %438
    %442 = vset.pattern.permute.xlu0 0
    %443 = vperm.xlu0 %442, %v429
    %v444 = vpop.permute.xlu0 %443
    %447 = vset.pattern.permute.xlu0 0
    %448 = vperm.xlu0 %447, %v430
    %v449 = vpop.permute.xlu0 %448
    %v451 = vadd.f32 %v423, %v434
    %v452 = vadd.f32 %v424, %v439
    %v453 = vadd.f32 %v425, %v444
    %v454 = vadd.f32 %v426, %v449
    %v455 = vxor.u32 %v451, 2147483648
    %v456 = vxor.u32 %v452, 2147483648
    %v457 = vxor.u32 %v453, 2147483648
    %v458 = vxor.u32 %v454, 2147483648
    %v459 = vmul.f32 %v455, 1.442695
    %v460 = vpow.pop %v459
    %v461 = vmul.f32 %v456, 1.442695
    %v462 = vpow.pop %v461
    %v463 = vmul.f32 %v457, 1.442695
    %v464 = vpow.pop %v463
    %v465 = vmul.f32 %v458, 1.442695
    %v466 = vpow.pop %v465
    %v467 = vadd.f32 %v460, 1.0
    %v468 = vadd.f32 %v462, 1.0
    %v469 = vadd.f32 %v464, 1.0
    %v470 = vadd.f32 %v466, 1.0
    %v471 = vrcp.pop %v467
    %v472 = vmul.f32 1.0, %v471
    %v473 = vrcp.pop %v468
    %v474 = vmul.f32 1.0, %v473
    %v475 = vrcp.pop %v469
    %v476 = vmul.f32 1.0, %v475
    %v477 = vrcp.pop %v470
    %v478 = vmul.f32 1.0, %v477
    %v479 = vld [vmem:[%s8] sm:$0xf]
    %v480 = vld [vmem:[%s8 + $0x4] sm:$0xf]
    %v481 = vld [vmem:[%s8 + $0x8] sm:$0xf]
    %v482 = vld [vmem:[%s8 + $0xc] sm:$0xf]
    %v483 = vpack.c.bf16 %v474, %v472
    %v484 = vpack.c.bf16 %v478, %v476
    %v485 = vld [vmem:[%s9] sm:$0xff]
    %v486 = vld [vmem:[%s9 + $0x8] sm:$0xff]
    %v487 = vld [vmem:[%s9 + $0x10] sm:$0xff]
    %v488 = vld [vmem:[%s9 + $0x18] sm:$0xff]
    %490 = vset.pattern.permute.xlu0 0
    %491 = vperm.xlu0 %490, %v485
    %v492 = vpop.permute.xlu0 %491
    %495 = vset.pattern.permute.xlu0 0
    %496 = vperm.xlu0 %495, %v486
    %v497 = vpop.permute.xlu0 %496
    %500 = vset.pattern.permute.xlu0 0
    %501 = vperm.xlu0 %500, %v487
    %v502 = vpop.permute.xlu0 %501
    %505 = vset.pattern.permute.xlu0 0
    %506 = vperm.xlu0 %505, %v488
    %v507 = vpop.permute.xlu0 %506
    %v513 = vunpack.c.l.b16 %v479
    %v514 = vunpack.c.l.b16 %v480
    %v515 = vunpack.c.l.b16 %v481
    %v516 = vunpack.c.l.b16 %v482
    %v517 = vpack.c.b16 %v514, %v513
    %v518 = vpack.c.b16 %v516, %v515
    %vm519 = vcmask 261120
    %v521 = vsel %vm519, %v517, 0
    %v524 = vsel %vm519, %v518, 0
    %526 = vmatprep.subr.bf16.mxu0 0
    %527 = vmatpush1.bf16.msra.mxu0 %v483
    %528 = vmatprep.subr.bf16.mxu0 0
    %529 = vmatpush1.bf16.msra.mxu0 %v484
    %530 = vmatprep.subr.bf16.mxu0 0
    %531 = vmatpush1.bf16.msra.mxu0 0
    %532 = vmatprep.subr.bf16.mxu0 0
    %533 = vmatpush1.bf16.msra.mxu0 0
    %534 = vmatprep.subr.bf16.mxu0 0
    %535 = vmatpush1.bf16.msra.mxu0 0
    %536 = vmatprep.subr.bf16.mxu0 0
    %537 = vmatpush1.bf16.msra.mxu0 0
    %538 = vmatprep.subr.bf16.mxu0 0
    %539 = vmatpush1.bf16.msra.mxu0 0
    %540 = vmatprep.subr.bf16.mxu0 0
    %541 = vmatpush1.bf16.msra.mxu0 0
    %542 = vmatprep.subr.bf16.mxu0 0
    %543 = vmatpush1.bf16.msra.mxu0 0
    %544 = vmatprep.subr.bf16.mxu0 0
    %545 = vmatpush1.bf16.msra.mxu0 0
    %546 = vmatprep.subr.bf16.mxu0 0
    %547 = vmatpush1.bf16.msra.mxu0 0
    %548 = vmatprep.subr.bf16.mxu0 0
    %549 = vmatpush1.bf16.msra.mxu0 0
    %550 = vmatprep.subr.bf16.mxu0 0
    %551 = vmatpush1.bf16.msra.mxu0 0
    %552 = vmatprep.subr.bf16.mxu0 0
    %553 = vmatpush1.bf16.msra.mxu0 0
    %554 = vmatprep.subr.bf16.mxu0 0
    %555 = vmatpush1.bf16.msra.mxu0 0
    %556 = vmatprep.subr.bf16.mxu0 0
    %557 = vmatpush1.bf16.msra.mxu0 0
    %558 = vmatprep.mubr.bf16.mxu0 0
    %559 = vmatmul.mubr.bf16.gmra.mrb[0].mxu0 %v521
    %v560 = vpop.f32.mrb[0].mxu0
    %v561 = vadd.f32 %v492, %v560
    %v562 = vpop.f32.mrb[0].mxu0
    %v563 = vpop.f32.mrb[0].mxu0
    %v564 = vadd.f32 %v497, %v563
    %v565 = vpop.f32.mrb[0].mxu0
    %566 = vmatprep.mubr.bf16.mxu0 0
    %567 = vmatmul.mubr.bf16.gmra.mrb[0].mxu0 %v524
    %v568 = vpop.f32.mrb[0].mxu0
    %v569 = vadd.f32 %v502, %v568
    %v570 = vpop.f32.mrb[0].mxu0
    %v571 = vpop.f32.mrb[0].mxu0
    %v572 = vadd.f32 %v507, %v571
    %v573 = vpop.f32.mrb[0].mxu0
    %574 = vdwg.mxu0
    %v575 = vxor.u32 %v561, 2147483648
    %v576 = vxor.u32 %v564, 2147483648
    %v577 = vxor.u32 %v569, 2147483648
    %v578 = vxor.u32 %v572, 2147483648
    %v579 = vmul.f32 %v575, 1.442695
    %v580 = vpow.pop %v579
    %v581 = vmul.f32 %v576, 1.442695
    %v582 = vpow.pop %v581
    %v583 = vmul.f32 %v577, 1.442695
    %v584 = vpow.pop %v583
    %v585 = vmul.f32 %v578, 1.442695
    %v586 = vpow.pop %v585
    %v587 = vadd.f32 %v580, 1.0
    %v588 = vadd.f32 %v582, 1.0
    %v589 = vadd.f32 %v584, 1.0
    %v590 = vadd.f32 %v586, 1.0
    %v591 = vrcp.pop %v587
    %v592 = vmul.f32 1.0, %v591
    %v593 = vrcp.pop %v588
    %v594 = vmul.f32 1.0, %v593
    %v595 = vrcp.pop %v589
    %v596 = vmul.f32 1.0, %v595
    %v597 = vrcp.pop %v590
    %v598 = vmul.f32 1.0, %v597
    %v599 = vld [vmem:[%s10] sm:$0x1]
    %v600 = vpack.c.bf16 %v594, %v592
    %v601 = vpack.c.bf16 %v598, %v596
    %v602 = vld [vmem:[#allocation2] sm:$0x1]
    %604 = vset.pattern.permute.xlu0 0
    %605 = vperm.xlu0 %604, %v602
    %v606 = vpop.permute.xlu0 %605
    %v608 = vlaneseq
    %v609 = vshrl.u32 %v608, 7
    %v610 = vsub.s32 0, %v609
    %v611 = vrot.slane %v606, %v610
    %v613 = vsel %vm519, %v599, 0
    %615 = vmatprep.subr.bf16.mxu0 0
    %616 = vmatpush1.bf16.msra.mxu0 %v600
    %617 = vmatprep.subr.bf16.mxu0 0
    %618 = vmatpush1.bf16.msra.mxu0 %v601
    %619 = vmatprep.subr.bf16.mxu0 0
    %620 = vmatpush1.bf16.msra.mxu0 0
    %621 = vmatprep.subr.bf16.mxu0 0
    %622 = vmatpush1.bf16.msra.mxu0 0
    %623 = vmatprep.subr.bf16.mxu0 0
    %624 = vmatpush1.bf16.msra.mxu0 0
    %625 = vmatprep.subr.bf16.mxu0 0
    %626 = vmatpush1.bf16.msra.mxu0 0
    %627 = vmatprep.subr.bf16.mxu0 0
    %628 = vmatpush1.bf16.msra.mxu0 0
    %629 = vmatprep.subr.bf16.mxu0 0
    %630 = vmatpush1.bf16.msra.mxu0 0
    %631 = vmatprep.subr.bf16.mxu0 0
    %632 = vmatpush1.bf16.msra.mxu0 0
    %633 = vmatprep.subr.bf16.mxu0 0
    %634 = vmatpush1.bf16.msra.mxu0 0
    %635 = vmatprep.subr.bf16.mxu0 0
    %636 = vmatpush1.bf16.msra.mxu0 0
    %637 = vmatprep.subr.bf16.mxu0 0
    %638 = vmatpush1.bf16.msra.mxu0 0
    %639 = vmatprep.subr.bf16.mxu0 0
    %640 = vmatpush1.bf16.msra.mxu0 0
    %641 = vmatprep.subr.bf16.mxu0 0
    %642 = vmatpush1.bf16.msra.mxu0 0
    %643 = vmatprep.subr.bf16.mxu0 0
    %644 = vmatpush1.bf16.msra.mxu0 0
    %645 = vmatprep.subr.bf16.mxu0 0
    %646 = vmatpush1.bf16.msra.mxu0 0
    %647 = vmatprep.mubr.bf16.mxu0 0
    %648 = vmatmul.mubr.bf16.gmra.mrb[0].mxu0 %v613
    %v649 = vpop.f32.mrb[0].mxu0
    %v650 = vadd.f32 %v611, %v649
    %v651 = vpop.f32.mrb[0].mxu0
    %v652 = vpop.f32.mrb[0].mxu0
    %v653 = vpop.f32.mrb[0].mxu0
    %654 = vdwg.mxu0
    %v655 = vxor.u32 %v650, 2147483648
    %v656 = vmul.f32 %v655, 1.442695
    %v657 = vpow.pop %v656
    %v658 = vadd.f32 %v657, 1.0
    %v659 = vrcp.pop %v658
    %v660 = vmul.f32 1.0, %v659
    %661 = vst [vmem:[#allocation3] sm:$0x1] %v660
    // Predicated region
    $region50: #{tpu_custom_call.1} parent=1 // pred_check
      _
    $region51: #{tpu_custom_call.1} parent=1 // pred_check_branch
      %663 = sbr.rel (0) target = $region53
    $region52: #{tpu_custom_call.1} parent=1 // pred_region
      %s665 = ssub.s32 16, 16
      %666 = vsyncadd [#allocation4], %s665
      %s668 = sshll.u32 [#allocation3], 4
      %s669 = int_to_ptr.vmem [resolvable:$true] %s668
      %671 = dma.vmem_to_hbm [thread:$0]  %s669, 16, %s12, [#allocation4]
    $region53: #{tpu_custom_call.1} parent=1 // pred_fallthru
      _
    // Predicated region
    $region54: #{tpu_custom_call.1} parent=1 // pred_check
      _
    $region55: #{tpu_custom_call.1} parent=1 // pred_check_branch
      %673 = sbr.rel (0) target = $region57
    $region56: #{tpu_custom_call.1} parent=1 // pred_region
      %674 = dma.done [#allocation4], 16
    $region57: #{tpu_custom_call.1} parent=1 // pred_fallthru
      _
    %675 = vsyncpa [#allocation4], 1

</llo_original>
